<compile_context>
chip_gen: v6e
topology: v6e:2x2x1
jax: 0.10.0
libtpu: 0.0.40
codegen_flags: <defaults>
</compile_context>

<pallas_src>
import functools

import jax
import jax.numpy as jnp
from jax import lax
from jax.experimental import pallas as pl
from jax.experimental.pallas import tpu as pltpu


def _cols_select_kernel(x_ref, sel_ref, o_ref, *, width, precision):
    # x_ref:  (Rb, Wx)  -- rows are already the subsampled input rows (the
    #                      row-skip happened in the BlockSpec/DMA); only the
    #                      first `width` lanes are meaningful.
    # sel_ref:(W, Wo)   -- one-hot column selector, resident (constant index).
    # o_ref:  (Rb, Wo)
    rows = x_ref[:, :width]                                  # (Rb, W)
    out = jnp.dot(rows.astype(sel_ref.dtype), sel_ref[...],
                  preferred_element_type=jnp.float32,
                  precision=precision)                       # (Rb, Wo)
    o_ref[...] = out.astype(o_ref.dtype)


def _ragged_slice_kernel(x_ref, sel_ref, o_ref, *, scale, precision):
    # Fallback for H % scale != 0: one (H, W) slice per grid step.
    Ho, Wo = o_ref.shape
    rows = x_ref[pl.ds(0, Ho, stride=scale), :]              # sublane-strided
    out = jnp.dot(rows.astype(sel_ref.dtype), sel_ref[...],
                  preferred_element_type=jnp.float32,
                  precision=precision)
    o_ref[...] = out.astype(o_ref.dtype)


def _pick_row_block(num_rows, row_bytes, target_bytes=2 * 1024 * 1024):
    """Rows per grid step: multiple of 8 (sublane tiling), <= ~target_bytes of
    input per block, and >= 2 grid steps when possible (v7x megacore)."""
    if num_rows <= 8:
        return num_rows                       # full-dim block (always legal)
    cap = max(1, target_bytes // max(1, row_bytes))
    cap = max(8, (cap // 8) * 8)
    half = -(-num_rows // 2)                  # ceil(num_rows / 2)
    half = max(8, ((half + 7) // 8) * 8)
    return min(num_rows, min(cap, half))


def batch_subsample(x, scale=4):
    """Pallas equivalent of BatchSubsample: x[:, :, 0::scale, 0::scale]."""
    N, C, H, W = x.shape
    if scale == 1:
        return x
    Ho = -(-H // scale)   # ceil(H / scale)
    Wo = -(-W // scale)   # ceil(W / scale)

    # Hoisted one-hot column selector: sel[w, j] = 1 iff w == j*scale.
    if x.dtype == jnp.bfloat16:
        sel_dtype, precision = jnp.bfloat16, lax.Precision.DEFAULT
    else:
        sel_dtype, precision = jnp.float32, lax.Precision.HIGHEST
    sel = (jnp.arange(W, dtype=jnp.int32)[:, None]
           == (jnp.arange(Wo, dtype=jnp.int32) * scale)[None, :]).astype(sel_dtype)

    if H % scale == 0:
        # Batched fast path: row-skip at the DMA level.
        R = N * C * Ho                        # total output rows
        full_row = scale * W                  # one row-group, flattened
        Wx = min(full_row, ((W + 127) // 128) * 128)   # lane width of in-block
        x2 = x.reshape(R, full_row)           # free row-major regroup
        Rb = _pick_row_block(R, Wx * x.dtype.itemsize)
        grid = (pl.cdiv(R, Rb),)

        out2 = pl.pallas_call(
            functools.partial(_cols_select_kernel, width=W, precision=precision),
            out_shape=jax.ShapeDtypeStruct((R, Wo), x.dtype),
            grid=grid,
            in_specs=[
                # Lane-block index pinned to 0: only the wanted rows' data
                # (plus at most one 128-lane round-up) is ever DMA'd.
                pl.BlockSpec((Rb, Wx), lambda i: (i, 0)),
                # Selector: constant block -> resident across grid steps.
                pl.BlockSpec((W, Wo), lambda i: (0, 0)),
            ],
            out_specs=pl.BlockSpec((Rb, Wo), lambda i: (i, 0)),
            compiler_params=pltpu.CompilerParams(
                dimension_semantics=("parallel",),
                vmem_limit_bytes=32 * 1024 * 1024,
            ),
        )(x2, sel)
        return out2.reshape(N, C, Ho, Wo)

    # Ragged H fallback: per-(n, c) slice, in-kernel strided row read.
    kernel = functools.partial(_ragged_slice_kernel, scale=scale,
                               precision=precision)
    return pl.pallas_call(
        kernel,
        out_shape=jax.ShapeDtypeStruct((N, C, Ho, Wo), x.dtype),
        grid=(N, C),
        in_specs=[
            pl.BlockSpec((None, None, H, W), lambda n, c: (n, c, 0, 0)),
            pl.BlockSpec((W, Wo), lambda n, c: (0, 0)),
        ],
        out_specs=pl.BlockSpec((None, None, Ho, Wo), lambda n, c: (n, c, 0, 0)),
        compiler_params=pltpu.CompilerParams(
            dimension_semantics=("parallel", "parallel"),
            vmem_limit_bytes=32 * 1024 * 1024,
        ),
    )(x, sel)


if __name__ == "__main__":
    key = jax.random.PRNGKey(0)
    scale = 4

    def _check(xx, s):
        y = jax.block_until_ready(batch_subsample(xx, scale=s))
        ref = xx[:, :, 0::s, 0::s]
        assert y.shape == ref.shape, (y.shape, ref.shape)
        assert y.dtype == ref.dtype, (y.dtype, ref.dtype)
        assert jnp.allclose(y.astype(jnp.float32), ref.astype(jnp.float32),
                            rtol=0.0, atol=1e-6), "mismatch vs reference"

    k0, k1, k2, k3 = jax.random.split(key, 4)

    # Primary shape from the module spec.
    x0 = jax.random.normal(k0, (2, 4, 16, 16), dtype=jnp.float32)
    _check(x0, scale)
    # W % 128 == 0 -> row-skip fully at the DMA/BlockSpec level.
    _check(jax.random.normal(k1, (2, 4, 16, 128), dtype=jnp.float32), scale)
    # 128 < scale*W with W not a multiple of 128 -> rounded lane block + slice.
    _check(jax.random.normal(k2, (1, 2, 8, 160), dtype=jnp.float32), scale)
    # Ragged H -> per-(n, c) fallback path.
    _check(jax.random.normal(k3, (2, 3, 10, 16), dtype=jnp.float32), scale)
    # bf16 -> bf16 selector, default MXU precision (exact for one-hot).
    _check(x0.astype(jnp.bfloat16), scale)

    print("KERNEL_OK")
</pallas_src>

<mosaic_0001>
module attributes {stable_mosaic.version = 11 : i64} {
  func.func @_cols_select_kernel(%arg0: i32, %arg1: memref<16x64xf32, #tpu.memory_space<vmem>>, %arg2: memref<16x4xf32, #tpu.memory_space<vmem>>, %arg3: memref<16x4xf32, #tpu.memory_space<vmem>>) attributes {dimension_semantics = [#tpu.dimension_semantics<parallel>], iteration_bounds = array<i64: 2>, scalar_prefetch = 0 : i64, scratch_operands = 0 : i64, tpu.core_type = #tpu.core_type<tc>, window_params = [{transform_indices = @transform_0, window_bounds = array<i64: 16, 64>}, {pipeline_mode = #tpu.pipeline_mode<synchronous>, transform_indices = @transform_1, window_bounds = array<i64: 16, 4>}, {transform_indices = @transform_2, window_bounds = array<i64: 16, 4>}]} {
    %c0 = arith.constant 0 : index
    %c0_0 = arith.constant 0 : index
    %0 = vector.load %arg1[%c0, %c0_0] : memref<16x64xf32, #tpu.memory_space<vmem>>, vector<16x16xf32>
    %c0_1 = arith.constant 0 : index
    %c0_2 = arith.constant 0 : index
    %1 = vector.load %arg2[%c0_1, %c0_2] : memref<16x4xf32, #tpu.memory_space<vmem>>, vector<16x4xf32>
    %cst = arith.constant dense<0.000000e+00> : vector<16x4xf32>
    %2 = tpu.matmul %0, %1, %cst {dimension_numbers = #tpu.dot_dimension_numbers<[1], [0], [0], [1], [0, 0, 1, 1], [], []>, precision = #tpu.contract_precision<fp32>} : vector<16x16xf32>, vector<16x4xf32>, vector<16x4xf32> -> vector<16x4xf32>
    %c0_3 = arith.constant 0 : index
    %c0_4 = arith.constant 0 : index
    %3 = vector.load %arg3[%c0_3, %c0_4] : memref<16x4xf32, #tpu.memory_space<vmem>>, vector<16x4xf32>
    tpu.vector_store %arg3[%c0_3, %c0_4], %2 {strides = array<i32>} : memref<16x4xf32, #tpu.memory_space<vmem>>, vector<16x4xf32>,
    return
  }
  func.func @transform_0(%arg0: i32) -> (i32, i32) {
    %c0_i32 = arith.constant 0 : i32
    %c0_i32_0 = arith.constant 0 : i32
    return %arg0, %c0_i32 : i32, i32
  }
  func.func @transform_1(%arg0: i32) -> (i32, i32) {
    %c0_i32 = arith.constant 0 : i32
    %c0_i32_0 = arith.constant 0 : i32
    %c0_i32_1 = arith.constant 0 : i32
    return %c0_i32, %c0_i32_0 : i32, i32
  }
  func.func @transform_2(%arg0: i32) -> (i32, i32) {
    %c0_i32 = arith.constant 0 : i32
    %c0_i32_0 = arith.constant 0 : i32
    return %arg0, %c0_i32 : i32, i32
  }
}

</mosaic_0001>

<llo_original>
// kernel: tpu_custom_call.1
$region0: #{tpu_custom_call.1}
  #allocation0 [shape = 'u32[]', space=smem, size = 0x4, offset = 0x4, fixed_abs, tag = 'smem constant byte address 0x4 - core index']
  #allocation1 [shape = 'u32[144,128]{1,0:T(1,128)}', space=vmem, size = 0x12000, scoped, tag = 'internal scratch']
  %s0 = inlined_call_operand.hbm [shape: f32[32,64], index: 0, kind: input, shape index: {}]
  %s1 = inlined_call_operand.vmem [shape: f32[16,4], index: 1, kind: input, shape index: {}]
  %s2 = inlined_call_operand.vmem [shape: f32[32,4], index: 2, kind: output, shape index: {}]
  %s3 = sld [smem:[#allocation0]]
  $region45: #{tpu_custom_call.1} parent=0
    _
  %s5 = ssub.s32 1, %s3
  %s6 = scalar_select 0, %s5, %s3
  $region1: #{tpu_custom_call.1} parent=0
    #allocation2 [shape = 'u8[16384]{0}', space=vmem, size = 0x4000, scoped, tag = 'input window, operand 0']
    #allocation3 [shape = 's32[2]{0}', space=sflag, size = 0x8, scoped, tag = 'scoped memory for tpu_custom_call.1']
    %7 = vsyncpa [#allocation3], 0
    %s8 = scalar_lea.sflag [#allocation3], 1
    %9 = vsyncpa %s8, 0
    loop: start=0, step=1, limit=4
    $region2: #{tpu_custom_call.1} parent=1 // loop_pre_header
      _
    $region3: #{tpu_custom_call.1} parent=1 // loop_header
      %s11 = sphi 0, %s15
      %p12 = scmp.ge.s32.totalorder %s11, 4
      %s21 = sphi 0, %s23
      %s24 = sphi 0, %s21
      %s25 = sphi 0, %s24
      %s41 = sphi 0, %s25
      %s45 = sphi 0, %s45
      %s47 = sphi 0, %s45
      %s48 = sphi 0, %s47
      %s62 = sphi 0, %s48
      %s68 = sphi 0, %s70
      %s71 = sphi 0, %s68
      %s72 = sphi 0, %s71
      %s88 = sphi 0, %s72
    $region4: #{tpu_custom_call.1} parent=1 // loop_header_branch
      %14 = sbr.rel (%p12) target = $region8
    $region5: #{tpu_custom_call.1} parent=1 // loop_body
      %s16 = ssub.s32 %s11, 1
      %s17 = ssub.s32 %s11, 2
      %s18 = sadd.s32 %s11, 1
      %s19 = ssub.s32 %s11, %s18
      %p20 = scmp.eq.s32.totalorder %s19, 0
      %s22 = sadd.s32 %s21, 1
      %s23 = scalar_select %p20, %s21, %s22
      %p26 = pneg %p20
      %p27 = scmp.eq.s32.totalorder %s11, 1
      %p28 = por %p26, %p27
      %p29 = scmp.ne.s32.totalorder %s21, %s24
      %p30 = scmp.eq.s32.totalorder %s11, 0
      %p31 = por %p29, %p30
      %p32 = scmp.ne.s32.totalorder %s21, %s24
      %p33 = scmp.eq.s32.totalorder %s16, 1
      %p34 = por %p32, %p33
      %p35 = scmp.ne.s32.totalorder %s24, %s25
      %p36 = scmp.eq.s32.totalorder %s16, 0
      %p37 = por %p35, %p36
      %p38 = scmp.ne.s32.totalorder %s24, %s25
      %p39 = scmp.eq.s32.totalorder %s17, 1
      %p40 = por %p38, %p39
      %p42 = scmp.ne.s32.totalorder %s25, %s41
      %p43 = scmp.eq.s32.totalorder %s17, 0
      %p44 = por %p42, %p43
      %s46 = sadd.s32 %s45, 1
      %p49 = scmp.eq.s32.totalorder %s11, 1
      %p50 = scmp.ne.s32.totalorder %s45, %s47
      %p51 = scmp.eq.s32.totalorder %s11, 0
      %p52 = por %p50, %p51
      %p53 = scmp.ne.s32.totalorder %s45, %s47
      %p54 = scmp.eq.s32.totalorder %s16, 1
      %p55 = por %p53, %p54
      %p56 = scmp.ne.s32.totalorder %s47, %s48
      %p57 = scmp.eq.s32.totalorder %s16, 0
      %p58 = por %p56, %p57
      %p59 = scmp.ne.s32.totalorder %s47, %s48
      %p60 = scmp.eq.s32.totalorder %s17, 1
      %p61 = por %p59, %p60
      %p63 = scmp.ne.s32.totalorder %s48, %s62
      %p64 = scmp.eq.s32.totalorder %s17, 0
      %p65 = por %p63, %p64
      %s66 = ssub.s32 %s11, %s18
      %p67 = scmp.eq.s32.totalorder %s66, 0
      %s69 = sadd.s32 %s68, 1
      %s70 = scalar_select %p67, %s68, %s69
      %p73 = pneg %p67
      %p74 = scmp.eq.s32.totalorder %s11, 1
      %p75 = por %p73, %p74
      %p76 = scmp.ne.s32.totalorder %s68, %s71
      %p77 = scmp.eq.s32.totalorder %s11, 0
      %p78 = por %p76, %p77
      %p79 = scmp.ne.s32.totalorder %s68, %s71
      %p80 = scmp.eq.s32.totalorder %s16, 1
      %p81 = por %p79, %p80
      %p82 = scmp.ne.s32.totalorder %s71, %s72
      %p83 = scmp.eq.s32.totalorder %s16, 0
      %p84 = por %p82, %p83
      %p85 = scmp.ne.s32.totalorder %s71, %s72
      %p86 = scmp.eq.s32.totalorder %s17, 1
      %p87 = por %p85, %p86
      %p89 = scmp.ne.s32.totalorder %s72, %s88
      %p90 = scmp.eq.s32.totalorder %s17, 0
      %p91 = por %p89, %p90
      %p92 = scmp.le.s32.totalorder 1, %s11
      %p93 = scmp.lt.s32.totalorder %s11, 3
      %p94 = pnand %p92, %p93
      %p95 = pneg %p94
      // Predicated region
      $region9: #{tpu_custom_call.1} parent=5 // pred_check
        _
      $region10: #{tpu_custom_call.1} parent=5 // pred_check_branch
        %97 = sbr.rel (%p94) target = $region12
      $region11: #{tpu_custom_call.1} parent=5 // pred_region
        %s98 = ssub.s32 %s11, 1
        // Predicated region
        $region13: #{tpu_custom_call.1} parent=11 // pred_check
          %p99 = pneg %p58
        $region14: #{tpu_custom_call.1} parent=11 // pred_check_branch
          %101 = sbr.rel (%p99) target = $region16
        $region15: #{tpu_custom_call.1} parent=11 // pred_region
          _
        $region16: #{tpu_custom_call.1} parent=11 // pred_fallthru
          _
      $region12: #{tpu_custom_call.1} parent=5 // pred_fallthru
        _
      %p102 = scmp.lt.s32.totalorder %s11, 2
      // Predicated region
      $region17: #{tpu_custom_call.1} parent=5 // pred_check
        %p103 = pneg %p102
      $region18: #{tpu_custom_call.1} parent=5 // pred_check_branch
        %105 = sbr.rel (%p103) target = $region20
      $region19: #{tpu_custom_call.1} parent=5 // pred_region
        // Predicated region
        $region21: #{tpu_custom_call.1} parent=19 // pred_check
          %p106 = pneg %p31
        $region22: #{tpu_custom_call.1} parent=19 // pred_check_branch
          %108 = sbr.rel (%p106) target = $region24
        $region23: #{tpu_custom_call.1} parent=19 // pred_region
          %s109 = sand.u32 %s21, 1
          %s110 = scalar_lea.sflag [#allocation3], %s109
          %s111 = sand.u32 %s21, 1
          %s112 = smul.addr %s111, 16
          %s113 = scalar_lea.vmem [#allocation2], %s112
          %s114 = smul.u32 2, %s11
          %s116 = ssub.s32 256, 256
          %117 = vsyncadd %s110, %s116
          %s118 = smul.addr %s114, 128
          %s119 = scalar_lea.hbm %s0, %s118
          %s120 = sshll.u32 %s113, 4
          %s121 = int_to_ptr.vmem [resolvable:$true] %s120
          %126 = dma.hbm_to_vmem [thread:$0]  %s119, 256, %s121, %s110, 128, 128, 8
        $region24: #{tpu_custom_call.1} parent=19 // pred_fallthru
          _
      $region20: #{tpu_custom_call.1} parent=5 // pred_fallthru
        _
      %p127 = scmp.le.s32.totalorder 1, %s11
      %p128 = scmp.lt.s32.totalorder %s11, 3
      %p129 = pnand %p127, %p128
      %p130 = pneg %p129
      // Predicated region
      $region25: #{tpu_custom_call.1} parent=5 // pred_check
        _
      $region26: #{tpu_custom_call.1} parent=5 // pred_check_branch
        %132 = sbr.rel (%p129) target = $region28
      $region27: #{tpu_custom_call.1} parent=5 // pred_region
        %s133 = ssub.s32 %s11, 1
        %s134 = sand.u32 %s24, 1
        %s135 = scalar_lea.sflag [#allocation3], %s134
        %s136 = sand.u32 %s24, 1
        %s137 = smul.addr %s136, 16
        %s138 = scalar_lea.vmem [#allocation2], %s137
        // Predicated region
        $region29: #{tpu_custom_call.1} parent=27 // pred_check
          %p139 = pneg %p37
        $region30: #{tpu_custom_call.1} parent=27 // pred_check_branch
          %141 = sbr.rel (%p139) target = $region32
        $region31: #{tpu_custom_call.1} parent=27 // pred_region
          %142 = dma.done %s135, 256
        $region32: #{tpu_custom_call.1} parent=27 // pred_fallthru
          _
        %s143 = sand.u32 %s24, 1
        %s144 = scalar_lea.sflag [#allocation3], %s143
        %s145 = sand.u32 %s24, 1
        %s146 = smul.addr %s145, 16
        %s147 = scalar_lea.vmem [#allocation2], %s146
        %p148 = pneg %p37
        %p149 = pneg %p34
        %p150 = pneg %p58
        %p151 = pneg %p55
        %p152 = pneg %p84
        %p153 = pneg %p81
        %s154 = smul.u32 2, %s16
        %p155 = scmp.lt.s32.totalorder %s154, 3
        %s156 = scalar_select %p155, %s154, 3
        %s157 = smul.addr %s156, 8
        %s158 = scalar_lea.vmem %s2, %s157
        %s159 = smul.u32 2, %s16
        %s160 = smul.u32 2, %s16
        %p161 = scmp.lt.s32.totalorder %s160, 3
        %s162 = scalar_select %p161, %s160, 3
        %s163 = smul.addr %s162, 8
        %s164 = scalar_lea.vmem %s2, %s163
        %s165 = smul.u32 2, %s16
        %v166 = vld [vmem:[%s138] sm:$0xff]
        %v167 = vld [vmem:[%s138 + $0x8] sm:$0xff]
        %v168 = vld [vmem:[%s1] sm:$0xff]
        %v169 = vld [vmem:[%s1 + $0x8] sm:$0xff]
        %vm170 = vcmask 130048
        %v172 = vsel %vm170, %v166, 0
        %v175 = vsel %vm170, %v167, 0
        %177 = vmatprep.subr.mxu0 0.0
        %178 = vmatpush1.msra.mxu0 0.0
        %179 = vmatprep.subr.mxu0 0.0
        %180 = vmatpush1.msra.mxu0 0.0
        %181 = vmatprep.subr.mxu0 0.0
        %182 = vmatpush1.msra.mxu0 0.0
        %183 = vmatprep.subr.mxu0 0.0
        %184 = vmatpush1.msra.mxu0 0.0
        %185 = vmatprep.subr.mxu0 0.0
        %186 = vmatpush1.msra.mxu0 0.0
        %187 = vmatprep.subr.mxu0 0.0
        %188 = vmatpush1.msra.mxu0 0.0
        %189 = vmatprep.subr.mxu0 0.0
        %190 = vmatpush1.msra.mxu0 0.0
        %191 = vmatprep.subr.mxu0 0.0
        %192 = vmatpush1.msra.mxu0 0.0
        %193 = vmatprep.subr.mxu0 0.0
        %194 = vmatpush1.msra.mxu0 0.0
        %195 = vmatprep.subr.mxu0 0.0
        %196 = vmatpush1.msra.mxu0 0.0
        %197 = vmatprep.subr.mxu0 0.0
        %198 = vmatpush1.msra.mxu0 0.0
        %199 = vmatprep.subr.mxu0 0.0
        %200 = vmatpush1.msra.mxu0 0.0
        %201 = vmatprep.subr.mxu0 0.0
        %202 = vmatpush1.msra.mxu0 0.0
        %203 = vmatprep.subr.mxu0 0.0
        %204 = vmatpush1.msra.mxu0 0.0
        %205 = vmatprep.subr.mxu0 0.0
        %v206 = vand.u32 %v169, 4294901760
        %207 = vmatpush1.msra.mxu0 %v206
        %208 = vmatprep.subr.mxu0 0.0
        %v209 = vand.u32 %v168, 4294901760
        %210 = vmatpush1.msra.mxu0 %v209
        %211 = vmatprep.subr.mxu0 0.0
        %212 = vmatpush2.msra.mxu0 0.0
        %213 = vmatprep.subr.mxu0 0.0
        %214 = vmatpush2.msra.mxu0 0.0
        %215 = vmatprep.subr.mxu0 0.0
        %216 = vmatpush2.msra.mxu0 0.0
        %217 = vmatprep.subr.mxu0 0.0
        %218 = vmatpush2.msra.mxu0 0.0
        %219 = vmatprep.subr.mxu0 0.0
        %220 = vmatpush2.msra.mxu0 0.0
        %221 = vmatprep.subr.mxu0 0.0
        %222 = vmatpush2.msra.mxu0 0.0
        %223 = vmatprep.subr.mxu0 0.0
        %224 = vmatpush2.msra.mxu0 0.0
        %225 = vmatprep.subr.mxu0 0.0
        %226 = vmatpush2.msra.mxu0 0.0
        %227 = vmatprep.subr.mxu0 0.0
        %228 = vmatpush2.msra.mxu0 0.0
        %229 = vmatprep.subr.mxu0 0.0
        %230 = vmatpush2.msra.mxu0 0.0
        %231 = vmatprep.subr.mxu0 0.0
        %232 = vmatpush2.msra.mxu0 0.0
        %233 = vmatprep.subr.mxu0 0.0
        %234 = vmatpush2.msra.mxu0 0.0
        %235 = vmatprep.subr.mxu0 0.0
        %236 = vmatpush2.msra.mxu0 0.0
        %237 = vmatprep.subr.mxu0 0.0
        %238 = vmatpush2.msra.mxu0 0.0
        %239 = vmatprep.subr.mxu0 0.0
        %240 = vmatpush2.msra.mxu0 0.0
        %241 = vmatprep.subr.mxu0 0.0
        %242 = vmatpush2.msra.mxu0 0.0
        %243 = vmatprep.mubr.f32.mxu0 0.0
        %v244 = vand.u32 %v172, 4294901760
        %v245 = vsub.f32 %v172, %v244
        %v246 = vand.u32 %v245, 4294901760
        %v247 = vsub.f32 %v245, %v246
        %v248 = vand.u32 %v247, 4294901760
        %249 = vmatmul.mubr.f32.gmra.mxu0 %v248
        %v250 = vpop.f32.mrf.mxu0
        %v251 = vadd.f32 0.0, %v250
        %v252 = vpop.f32.mrf.mxu0
        %253 = vmatprep.mubr.f32.mxu0 0.0
        %v254 = vand.u32 %v175, 4294901760
        %v255 = vsub.f32 %v175, %v254
        %v256 = vand.u32 %v255, 4294901760
        %v257 = vsub.f32 %v255, %v256
        %v258 = vand.u32 %v257, 4294901760
        %259 = vmatmul.mubr.f32.gmra.mxu0 %v258
        %v260 = vpop.f32.mrf.mxu0
        %v261 = vadd.f32 0.0, %v260
        %v262 = vpop.f32.mrf.mxu0
        %263 = vdwg.mxu0
        %264 = vmatprep.subr.mxu0 0.0
        %265 = vmatpush1.msra.mxu0 0.0
        %266 = vmatprep.subr.mxu0 0.0
        %267 = vmatpush1.msra.mxu0 0.0
        %268 = vmatprep.subr.mxu0 0.0
        %269 = vmatpush1.msra.mxu0 0.0
        %270 = vmatprep.subr.mxu0 0.0
        %271 = vmatpush1.msra.mxu0 0.0
        %272 = vmatprep.subr.mxu0 0.0
        %273 = vmatpush1.msra.mxu0 0.0
        %274 = vmatprep.subr.mxu0 0.0
        %275 = vmatpush1.msra.mxu0 0.0
        %276 = vmatprep.subr.mxu0 0.0
        %277 = vmatpush1.msra.mxu0 0.0
        %278 = vmatprep.subr.mxu0 0.0
        %279 = vmatpush1.msra.mxu0 0.0
        %280 = vmatprep.subr.mxu0 0.0
        %281 = vmatpush1.msra.mxu0 0.0
        %282 = vmatprep.subr.mxu0 0.0
        %283 = vmatpush1.msra.mxu0 0.0
        %284 = vmatprep.subr.mxu0 0.0
        %285 = vmatpush1.msra.mxu0 0.0
        %286 = vmatprep.subr.mxu0 0.0
        %287 = vmatpush1.msra.mxu0 0.0
        %288 = vmatprep.subr.mxu0 0.0
        %289 = vmatpush1.msra.mxu0 0.0
        %290 = vmatprep.subr.mxu0 0.0
        %291 = vmatpush1.msra.mxu0 0.0
        %292 = vmatprep.subr.mxu0 0.0
        %v293 = vand.u32 %v169, 4294901760
        %v294 = vsub.f32 %v169, %v293
        %v295 = vand.u32 %v294, 4294901760
        %v296 = vsub.f32 %v294, %v295
        %v297 = vand.u32 %v296, 4294901760
        %298 = vmatpush1.msra.mxu0 %v297
        %299 = vmatprep.subr.mxu0 0.0
        %v300 = vand.u32 %v168, 4294901760
        %v301 = vsub.f32 %v168, %v300
        %v302 = vand.u32 %v301, 4294901760
        %v303 = vsub.f32 %v301, %v302
        %v304 = vand.u32 %v303, 4294901760
        %305 = vmatpush1.msra.mxu0 %v304
        %306 = vmatprep.subr.mxu0 0.0
        %307 = vmatpush2.msra.mxu0 0.0
        %308 = vmatprep.subr.mxu0 0.0
        %309 = vmatpush2.msra.mxu0 0.0
        %310 = vmatprep.subr.mxu0 0.0
        %311 = vmatpush2.msra.mxu0 0.0
        %312 = vmatprep.subr.mxu0 0.0
        %313 = vmatpush2.msra.mxu0 0.0
        %314 = vmatprep.subr.mxu0 0.0
        %315 = vmatpush2.msra.mxu0 0.0
        %316 = vmatprep.subr.mxu0 0.0
        %317 = vmatpush2.msra.mxu0 0.0
        %318 = vmatprep.subr.mxu0 0.0
        %319 = vmatpush2.msra.mxu0 0.0
        %320 = vmatprep.subr.mxu0 0.0
        %321 = vmatpush2.msra.mxu0 0.0
        %322 = vmatprep.subr.mxu0 0.0
        %323 = vmatpush2.msra.mxu0 0.0
        %324 = vmatprep.subr.mxu0 0.0
        %325 = vmatpush2.msra.mxu0 0.0
        %326 = vmatprep.subr.mxu0 0.0
        %327 = vmatpush2.msra.mxu0 0.0
        %328 = vmatprep.subr.mxu0 0.0
        %329 = vmatpush2.msra.mxu0 0.0
        %330 = vmatprep.subr.mxu0 0.0
        %331 = vmatpush2.msra.mxu0 0.0
        %332 = vmatprep.subr.mxu0 0.0
        %333 = vmatpush2.msra.mxu0 0.0
        %334 = vmatprep.subr.mxu0 0.0
        %335 = vmatpush2.msra.mxu0 0.0
        %336 = vmatprep.subr.mxu0 0.0
        %337 = vmatpush2.msra.mxu0 0.0
        %338 = vmatprep.mubr.f32.mxu0 0.0
        %v339 = vand.u32 %v172, 4294901760
        %340 = vmatmul.mubr.f32.gmra.mxu0 %v339
        %v341 = vpop.f32.mrf.mxu0
        %v342 = vadd.f32 %v251, %v341
        %v343 = vpop.f32.mrf.mxu0
        %344 = vmatprep.mubr.f32.mxu0 0.0
        %v345 = vand.u32 %v175, 4294901760
        %346 = vmatmul.mubr.f32.gmra.mxu0 %v345
        %v347 = vpop.f32.mrf.mxu0
        %v348 = vadd.f32 %v261, %v347
        %v349 = vpop.f32.mrf.mxu0
        %350 = vdwg.mxu0
        %351 = vmatprep.subr.mxu0 0.0
        %352 = vmatpush1.msra.mxu0 0.0
        %353 = vmatprep.subr.mxu0 0.0
        %354 = vmatpush1.msra.mxu0 0.0
        %355 = vmatprep.subr.mxu0 0.0
        %356 = vmatpush1.msra.mxu0 0.0
        %357 = vmatprep.subr.mxu0 0.0
        %358 = vmatpush1.msra.mxu0 0.0
        %359 = vmatprep.subr.mxu0 0.0
        %360 = vmatpush1.msra.mxu0 0.0
        %361 = vmatprep.subr.mxu0 0.0
        %362 = vmatpush1.msra.mxu0 0.0
        %363 = vmatprep.subr.mxu0 0.0
        %364 = vmatpush1.msra.mxu0 0.0
        %365 = vmatprep.subr.mxu0 0.0
        %366 = vmatpush1.msra.mxu0 0.0
        %367 = vmatprep.subr.mxu0 0.0
        %368 = vmatpush1.msra.mxu0 0.0
        %369 = vmatprep.subr.mxu0 0.0
        %370 = vmatpush1.msra.mxu0 0.0
        %371 = vmatprep.subr.mxu0 0.0
        %372 = vmatpush1.msra.mxu0 0.0
        %373 = vmatprep.subr.mxu0 0.0
        %374 = vmatpush1.msra.mxu0 0.0
        %375 = vmatprep.subr.mxu0 0.0
        %376 = vmatpush1.msra.mxu0 0.0
        %377 = vmatprep.subr.mxu0 0.0
        %378 = vmatpush1.msra.mxu0 0.0
        %379 = vmatprep.subr.mxu0 0.0
        %v380 = vand.u32 %v169, 4294901760
        %v381 = vsub.f32 %v169, %v380
        %382 = vmatpush1.msra.mxu0 %v381
        %383 = vmatprep.subr.mxu0 0.0
        %v384 = vand.u32 %v168, 4294901760
        %v385 = vsub.f32 %v168, %v384
        %386 = vmatpush1.msra.mxu0 %v385
        %387 = vmatprep.subr.mxu0 0.0
        %388 = vmatpush2.msra.mxu0 0.0
        %389 = vmatprep.subr.mxu0 0.0
        %390 = vmatpush2.msra.mxu0 0.0
        %391 = vmatprep.subr.mxu0 0.0
        %392 = vmatpush2.msra.mxu0 0.0
        %393 = vmatprep.subr.mxu0 0.0
        %394 = vmatpush2.msra.mxu0 0.0
        %395 = vmatprep.subr.mxu0 0.0
        %396 = vmatpush2.msra.mxu0 0.0
        %397 = vmatprep.subr.mxu0 0.0
        %398 = vmatpush2.msra.mxu0 0.0
        %399 = vmatprep.subr.mxu0 0.0
        %400 = vmatpush2.msra.mxu0 0.0
        %401 = vmatprep.subr.mxu0 0.0
        %402 = vmatpush2.msra.mxu0 0.0
        %403 = vmatprep.subr.mxu0 0.0
        %404 = vmatpush2.msra.mxu0 0.0
        %405 = vmatprep.subr.mxu0 0.0
        %406 = vmatpush2.msra.mxu0 0.0
        %407 = vmatprep.subr.mxu0 0.0
        %408 = vmatpush2.msra.mxu0 0.0
        %409 = vmatprep.subr.mxu0 0.0
        %410 = vmatpush2.msra.mxu0 0.0
        %411 = vmatprep.subr.mxu0 0.0
        %412 = vmatpush2.msra.mxu0 0.0
        %413 = vmatprep.subr.mxu0 0.0
        %414 = vmatpush2.msra.mxu0 0.0
        %415 = vmatprep.subr.mxu0 0.0
        %416 = vmatpush2.msra.mxu0 0.0
        %417 = vmatprep.subr.mxu0 0.0
        %418 = vmatpush2.msra.mxu0 0.0
        %419 = vmatprep.mubr.f32.mxu0 0.0
        %v420 = vand.u32 %v172, 4294901760
        %v421 = vsub.f32 %v172, %v420
        %422 = vmatmul.mubr.f32.gmra.mxu0 %v421
        %v423 = vpop.f32.mrf.mxu0
        %v424 = vadd.f32 %v342, %v423
        %v425 = vpop.f32.mrf.mxu0
        %426 = vmatprep.mubr.f32.mxu0 0.0
        %v427 = vand.u32 %v175, 4294901760
        %v428 = vsub.f32 %v175, %v427
        %429 = vmatmul.mubr.f32.gmra.mxu0 %v428
        %v430 = vpop.f32.mrf.mxu0
        %v431 = vadd.f32 %v348, %v430
        %v432 = vpop.f32.mrf.mxu0
        %433 = vdwg.mxu0
        %434 = vmatprep.subr.mxu0 0.0
        %435 = vmatpush1.msra.mxu0 0.0
        %436 = vmatprep.subr.mxu0 0.0
        %437 = vmatpush1.msra.mxu0 0.0
        %438 = vmatprep.subr.mxu0 0.0
        %439 = vmatpush1.msra.mxu0 0.0
        %440 = vmatprep.subr.mxu0 0.0
        %441 = vmatpush1.msra.mxu0 0.0
        %442 = vmatprep.subr.mxu0 0.0
        %443 = vmatpush1.msra.mxu0 0.0
        %444 = vmatprep.subr.mxu0 0.0
        %445 = vmatpush1.msra.mxu0 0.0
        %446 = vmatprep.subr.mxu0 0.0
        %447 = vmatpush1.msra.mxu0 0.0
        %448 = vmatprep.subr.mxu0 0.0
        %449 = vmatpush1.msra.mxu0 0.0
        %450 = vmatprep.subr.mxu0 0.0
        %451 = vmatpush1.msra.mxu0 0.0
        %452 = vmatprep.subr.mxu0 0.0
        %453 = vmatpush1.msra.mxu0 0.0
        %454 = vmatprep.subr.mxu0 0.0
        %455 = vmatpush1.msra.mxu0 0.0
        %456 = vmatprep.subr.mxu0 0.0
        %457 = vmatpush1.msra.mxu0 0.0
        %458 = vmatprep.subr.mxu0 0.0
        %459 = vmatpush1.msra.mxu0 0.0
        %460 = vmatprep.subr.mxu0 0.0
        %461 = vmatpush1.msra.mxu0 0.0
        %462 = vmatprep.subr.mxu0 0.0
        %v463 = vand.u32 %v169, 4294901760
        %464 = vmatpush1.msra.mxu0 %v463
        %465 = vmatprep.subr.mxu0 0.0
        %v466 = vand.u32 %v168, 4294901760
        %467 = vmatpush1.msra.mxu0 %v466
        %468 = vmatprep.subr.mxu0 0.0
        %469 = vmatpush2.msra.mxu0 0.0
        %470 = vmatprep.subr.mxu0 0.0
        %471 = vmatpush2.msra.mxu0 0.0
        %472 = vmatprep.subr.mxu0 0.0
        %473 = vmatpush2.msra.mxu0 0.0
        %474 = vmatprep.subr.mxu0 0.0
        %475 = vmatpush2.msra.mxu0 0.0
        %476 = vmatprep.subr.mxu0 0.0
        %477 = vmatpush2.msra.mxu0 0.0
        %478 = vmatprep.subr.mxu0 0.0
        %479 = vmatpush2.msra.mxu0 0.0
        %480 = vmatprep.subr.mxu0 0.0
        %481 = vmatpush2.msra.mxu0 0.0
        %482 = vmatprep.subr.mxu0 0.0
        %483 = vmatpush2.msra.mxu0 0.0
        %484 = vmatprep.subr.mxu0 0.0
        %485 = vmatpush2.msra.mxu0 0.0
        %486 = vmatprep.subr.mxu0 0.0
        %487 = vmatpush2.msra.mxu0 0.0
        %488 = vmatprep.subr.mxu0 0.0
        %489 = vmatpush2.msra.mxu0 0.0
        %490 = vmatprep.subr.mxu0 0.0
        %491 = vmatpush2.msra.mxu0 0.0
        %492 = vmatprep.subr.mxu0 0.0
        %493 = vmatpush2.msra.mxu0 0.0
        %494 = vmatprep.subr.mxu0 0.0
        %495 = vmatpush2.msra.mxu0 0.0
        %496 = vmatprep.subr.mxu0 0.0
        %497 = vmatpush2.msra.mxu0 0.0
        %498 = vmatprep.subr.mxu0 0.0
        %499 = vmatpush2.msra.mxu0 0.0
        %500 = vmatprep.mubr.f32.mxu0 0.0
        %v501 = vand.u32 %v172, 4294901760
        %v502 = vsub.f32 %v172, %v501
        %v503 = vand.u32 %v502, 4294901760
        %504 = vmatmul.mubr.f32.gmra.mxu0 %v503
        %v505 = vpop.f32.mrf.mxu0
        %v506 = vadd.f32 %v424, %v505
        %v507 = vpop.f32.mrf.mxu0
        %508 = vmatprep.mubr.f32.mxu0 0.0
        %v509 = vand.u32 %v175, 4294901760
        %v510 = vsub.f32 %v175, %v509
        %v511 = vand.u32 %v510, 4294901760
        %512 = vmatmul.mubr.f32.gmra.mxu0 %v511
        %v513 = vpop.f32.mrf.mxu0
        %v514 = vadd.f32 %v431, %v513
        %v515 = vpop.f32.mrf.mxu0
        %516 = vdwg.mxu0
        %517 = vmatprep.subr.mxu0 0.0
        %518 = vmatpush1.msra.mxu0 0.0
        %519 = vmatprep.subr.mxu0 0.0
        %520 = vmatpush1.msra.mxu0 0.0
        %521 = vmatprep.subr.mxu0 0.0
        %522 = vmatpush1.msra.mxu0 0.0
        %523 = vmatprep.subr.mxu0 0.0
        %524 = vmatpush1.msra.mxu0 0.0
        %525 = vmatprep.subr.mxu0 0.0
        %526 = vmatpush1.msra.mxu0 0.0
        %527 = vmatprep.subr.mxu0 0.0
        %528 = vmatpush1.msra.mxu0 0.0
        %529 = vmatprep.subr.mxu0 0.0
        %530 = vmatpush1.msra.mxu0 0.0
        %531 = vmatprep.subr.mxu0 0.0
        %532 = vmatpush1.msra.mxu0 0.0
        %533 = vmatprep.subr.mxu0 0.0
        %534 = vmatpush1.msra.mxu0 0.0
        %535 = vmatprep.subr.mxu0 0.0
        %536 = vmatpush1.msra.mxu0 0.0
        %537 = vmatprep.subr.mxu0 0.0
        %538 = vmatpush1.msra.mxu0 0.0
        %539 = vmatprep.subr.mxu0 0.0
        %540 = vmatpush1.msra.mxu0 0.0
        %541 = vmatprep.subr.mxu0 0.0
        %542 = vmatpush1.msra.mxu0 0.0
        %543 = vmatprep.subr.mxu0 0.0
        %544 = vmatpush1.msra.mxu0 0.0
        %545 = vmatprep.subr.mxu0 0.0
        %v546 = vand.u32 %v169, 4294901760
        %v547 = vsub.f32 %v169, %v546
        %v548 = vand.u32 %v547, 4294901760
        %549 = vmatpush1.msra.mxu0 %v548
        %550 = vmatprep.subr.mxu0 0.0
        %v551 = vand.u32 %v168, 4294901760
        %v552 = vsub.f32 %v168, %v551
        %v553 = vand.u32 %v552, 4294901760
        %554 = vmatpush1.msra.mxu0 %v553
        %555 = vmatprep.subr.mxu0 0.0
        %556 = vmatpush2.msra.mxu0 0.0
        %557 = vmatprep.subr.mxu0 0.0
        %558 = vmatpush2.msra.mxu0 0.0
        %559 = vmatprep.subr.mxu0 0.0
        %560 = vmatpush2.msra.mxu0 0.0
        %561 = vmatprep.subr.mxu0 0.0
        %562 = vmatpush2.msra.mxu0 0.0
        %563 = vmatprep.subr.mxu0 0.0
        %564 = vmatpush2.msra.mxu0 0.0
        %565 = vmatprep.subr.mxu0 0.0
        %566 = vmatpush2.msra.mxu0 0.0
        %567 = vmatprep.subr.mxu0 0.0
        %568 = vmatpush2.msra.mxu0 0.0
        %569 = vmatprep.subr.mxu0 0.0
        %570 = vmatpush2.msra.mxu0 0.0
        %571 = vmatprep.subr.mxu0 0.0
        %572 = vmatpush2.msra.mxu0 0.0
        %573 = vmatprep.subr.mxu0 0.0
        %574 = vmatpush2.msra.mxu0 0.0
        %575 = vmatprep.subr.mxu0 0.0
        %576 = vmatpush2.msra.mxu0 0.0
        %577 = vmatprep.subr.mxu0 0.0
        %578 = vmatpush2.msra.mxu0 0.0
        %579 = vmatprep.subr.mxu0 0.0
        %580 = vmatpush2.msra.mxu0 0.0
        %581 = vmatprep.subr.mxu0 0.0
        %582 = vmatpush2.msra.mxu0 0.0
        %583 = vmatprep.subr.mxu0 0.0
        %584 = vmatpush2.msra.mxu0 0.0
        %585 = vmatprep.subr.mxu0 0.0
        %586 = vmatpush2.msra.mxu0 0.0
        %587 = vmatprep.mubr.f32.mxu0 0.0
        %v588 = vand.u32 %v172, 4294901760
        %589 = vmatmul.mubr.f32.gmra.mxu0 %v588
        %v590 = vpop.f32.mrf.mxu0
        %v591 = vadd.f32 %v506, %v590
        %v592 = vpop.f32.mrf.mxu0
        %593 = vmatprep.mubr.f32.mxu0 0.0
        %v594 = vand.u32 %v175, 4294901760
        %595 = vmatmul.mubr.f32.gmra.mxu0 %v594
        %v596 = vpop.f32.mrf.mxu0
        %v597 = vadd.f32 %v514, %v596
        %v598 = vpop.f32.mrf.mxu0
        %599 = vdwg.mxu0
        %600 = vmatprep.subr.mxu0 0.0
        %601 = vmatpush1.msra.mxu0 0.0
        %602 = vmatprep.subr.mxu0 0.0
        %603 = vmatpush1.msra.mxu0 0.0
        %604 = vmatprep.subr.mxu0 0.0
        %605 = vmatpush1.msra.mxu0 0.0
        %606 = vmatprep.subr.mxu0 0.0
        %607 = vmatpush1.msra.mxu0 0.0
        %608 = vmatprep.subr.mxu0 0.0
        %609 = vmatpush1.msra.mxu0 0.0
        %610 = vmatprep.subr.mxu0 0.0
        %611 = vmatpush1.msra.mxu0 0.0
        %612 = vmatprep.subr.mxu0 0.0
        %613 = vmatpush1.msra.mxu0 0.0
        %614 = vmatprep.subr.mxu0 0.0
        %615 = vmatpush1.msra.mxu0 0.0
        %616 = vmatprep.subr.mxu0 0.0
        %617 = vmatpush1.msra.mxu0 0.0
        %618 = vmatprep.subr.mxu0 0.0
        %619 = vmatpush1.msra.mxu0 0.0
        %620 = vmatprep.subr.mxu0 0.0
        %621 = vmatpush1.msra.mxu0 0.0
        %622 = vmatprep.subr.mxu0 0.0
        %623 = vmatpush1.msra.mxu0 0.0
        %624 = vmatprep.subr.mxu0 0.0
        %625 = vmatpush1.msra.mxu0 0.0
        %626 = vmatprep.subr.mxu0 0.0
        %627 = vmatpush1.msra.mxu0 0.0
        %628 = vmatprep.subr.mxu0 0.0
        %v629 = vand.u32 %v169, 4294901760
        %630 = vmatpush1.msra.mxu0 %v629
        %631 = vmatprep.subr.mxu0 0.0
        %v632 = vand.u32 %v168, 4294901760
        %633 = vmatpush1.msra.mxu0 %v632
        %634 = vmatprep.subr.mxu0 0.0
        %635 = vmatpush2.msra.mxu0 0.0
        %636 = vmatprep.subr.mxu0 0.0
        %637 = vmatpush2.msra.mxu0 0.0
        %638 = vmatprep.subr.mxu0 0.0
        %639 = vmatpush2.msra.mxu0 0.0
        %640 = vmatprep.subr.mxu0 0.0
        %641 = vmatpush2.msra.mxu0 0.0
        %642 = vmatprep.subr.mxu0 0.0
        %643 = vmatpush2.msra.mxu0 0.0
        %644 = vmatprep.subr.mxu0 0.0
        %645 = vmatpush2.msra.mxu0 0.0
        %646 = vmatprep.subr.mxu0 0.0
        %647 = vmatpush2.msra.mxu0 0.0
        %648 = vmatprep.subr.mxu0 0.0
        %649 = vmatpush2.msra.mxu0 0.0
        %650 = vmatprep.subr.mxu0 0.0
        %651 = vmatpush2.msra.mxu0 0.0
        %652 = vmatprep.subr.mxu0 0.0
        %653 = vmatpush2.msra.mxu0 0.0
        %654 = vmatprep.subr.mxu0 0.0
        %655 = vmatpush2.msra.mxu0 0.0
        %656 = vmatprep.subr.mxu0 0.0
        %657 = vmatpush2.msra.mxu0 0.0
        %658 = vmatprep.subr.mxu0 0.0
        %659 = vmatpush2.msra.mxu0 0.0
        %660 = vmatprep.subr.mxu0 0.0
        %661 = vmatpush2.msra.mxu0 0.0
        %662 = vmatprep.subr.mxu0 0.0
        %663 = vmatpush2.msra.mxu0 0.0
        %664 = vmatprep.subr.mxu0 0.0
        %665 = vmatpush2.msra.mxu0 0.0
        %666 = vmatprep.mubr.f32.mxu0 0.0
        %v667 = vand.u32 %v172, 4294901760
        %668 = vmatmul.mubr.f32.gmra.mxu0 %v667
        %v669 = vpop.f32.mrf.mxu0
        %v670 = vadd.f32 %v591, %v669
        %v671 = vpop.f32.mrf.mxu0
        %672 = vmatprep.mubr.f32.mxu0 0.0
        %v673 = vand.u32 %v175, 4294901760
        %674 = vmatmul.mubr.f32.gmra.mxu0 %v673
        %v675 = vpop.f32.mrf.mxu0
        %v676 = vadd.f32 %v597, %v675
        %v677 = vpop.f32.mrf.mxu0
        %678 = vdwg.mxu0
        %vm679 = vcmask 31744
        %680 = vst.msk [vmem:[%s164] sm:$0xff] %vm679, %v670
        %681 = vst.msk [vmem:[%s164 + $0x8] sm:$0xff] %vm679, %v676
        %s682 = smul.u32 2, %s16
        %p683 = scmp.lt.s32.totalorder %s682, 3
        %s684 = scalar_select %p683, %s682, 3
        %s685 = smul.addr %s684, 8
        %s686 = scalar_lea.vmem %s2, %s685
        // Predicated region
        $region33: #{tpu_custom_call.1} parent=27 // pred_check
          %p687 = pneg %p81
        $region34: #{tpu_custom_call.1} parent=27 // pred_check_branch
          %689 = sbr.rel (%p687) target = $region36
        $region35: #{tpu_custom_call.1} parent=27 // pred_region
          %s690 = smul.u32 2, %s16
        $region36: #{tpu_custom_call.1} parent=27 // pred_fallthru
          _
      $region28: #{tpu_custom_call.1} parent=5 // pred_fallthru
        _
      %p691 = scmp.le.s32.totalorder 2, %s11
      // Predicated region
      $region37: #{tpu_custom_call.1} parent=5 // pred_check
        %p692 = pneg %p691
      $region38: #{tpu_custom_call.1} parent=5 // pred_check_branch
        %694 = sbr.rel (%p692) target = $region40
      $region39: #{tpu_custom_call.1} parent=5 // pred_region
        %s695 = ssub.s32 %s11, 2
        // Predicated region
        $region41: #{tpu_custom_call.1} parent=39 // pred_check
          %p696 = pneg %p87
        $region42: #{tpu_custom_call.1} parent=39 // pred_check_branch
          %698 = sbr.rel (%p696) target = $region44
        $region43: #{tpu_custom_call.1} parent=39 // pred_region
          %s699 = smul.u32 2, %s17
          %p700 = scmp.lt.s32.totalorder %s699, 3
          %s701 = scalar_select %p700, %s699, 3
          %s702 = smul.addr %s701, 8
          %s703 = scalar_lea.vmem %s2, %s702
        $region44: #{tpu_custom_call.1} parent=39 // pred_fallthru
          _
      $region40: #{tpu_custom_call.1} parent=5 // pred_fallthru
        _
    $region6: #{tpu_custom_call.1} parent=1 // loop_footer
      %s15 = sadd.s32 1, %s11
    $region7: #{tpu_custom_call.1} parent=1 // loop_footer_branch
      %10 = sbr.rel target = $region3
    $region8: #{tpu_custom_call.1} parent=1 // loop_exit
      _
    %704 = vsyncpa [#allocation3], 1
    %s705 = scalar_lea.sflag [#allocation3], 1
    %706 = vsyncpa %s705, 1

</llo_original>
